<compile_context>
chip_gen: v7x
topology: tpu7x:2x2x1
jax: 0.10.0
libtpu: 0.0.40
codegen_flags: <defaults>
</compile_context>

<pallas_src>
import functools
import math

import jax
import jax.numpy as jnp
from jax import lax
from jax.experimental import pallas as pl
from jax.experimental.pallas import tpu as pltpu

TEMPERATURE = 0.07
BASE_TEMPERATURE = 0.07          # module sets base_temperature = temperature
_LOSS_SCALE = -(TEMPERATURE / BASE_TEMPERATURE)
_NEG_BIG = -1e30                 # finite "-inf": exp underflows cleanly, no NaNs


def _round_up(x, m):
    return ((x + m - 1) // m) * m


def _pick_tm(bp, tm_req, sublane_mult):
    """Largest multiple of `sublane_mult` that divides bp, is <= tm_req, and
    (when bp allows) keeps >=2 row tiles so the 'parallel' axis can split
    across v7x's two TensorCores."""
    cap = max(sublane_mult, bp // 2)
    t = min(tm_req, cap, bp)
    t = max((t // sublane_mult) * sublane_mult, sublane_mult)
    while t > sublane_mult and bp % t:
        t -= sublane_mult
    return t


def _vmem_budget_bytes():
    # Budget against the smallest per-TensorCore VMEM of the supported chips
    # (v7x: 64 MiB) -> ~40 MiB working budget everywhere.
    try:
        cap = int(pltpu.get_tpu_info().vmem_capacity_bytes)
    except Exception:
        cap = 64 * 1024 * 1024
    return (min(cap, 64 * 1024 * 1024) * 5) // 8


# --------------------------------------------------------------------------- #
# Kernels
# --------------------------------------------------------------------------- #
def _crd_kernel_resident(alab_ref, clab_ref, npos_ref, f2_ref, f1_ref, out_ref,
                         *, batch, bp, tm, scale, col_pad, row_pad):
    """Single column tile (whole contrast matrix VMEM-resident per row tile)."""
    i = pl.program_id(0)

    # [TM, Bp] logits: native-dtype operands into the MXU, f32 accumulation.
    adc = lax.dot_general(
        f2_ref[...], f1_ref[...],
        dimension_numbers=(((1,), (1,)), ((), ())),
        preferred_element_type=jnp.float32)
    if scale != 1.0:                      # only when the wrapper could not fold 1/T
        adc = adc * scale

    # Positive-pair numerator.  Padded contrast rows are all-zero features, so
    # their (unmasked) logits are exactly 0 and contribute nothing to s.
    pos = (alab_ref[...] == clab_ref[...]).astype(jnp.float32)
    s = jnp.sum(pos * adc, axis=1, keepdims=True)

    # logsumexp over valid columns only (masking only exists if there is padding).
    if col_pad:
        col_ok = lax.broadcasted_iota(jnp.int32, (1, bp), 1) < batch
        adc_lse = jnp.where(col_ok, adc, _NEG_BIG)
    else:
        adc_lse = adc
    m = jnp.max(adc_lse, axis=1, keepdims=True)
    lse = m + jnp.log(jnp.sum(jnp.exp(adc_lse - m), axis=1, keepdims=True))

    loss_rows = _LOSS_SCALE * (s / npos_ref[...] - lse)
    if row_pad:
        row = i * tm + lax.broadcasted_iota(jnp.int32, (tm, 1), 0)
        loss_rows = jnp.where(row < batch, loss_rows, 0.0)
    # One lane-dense store per row tile; wrapper reduces the GR partials.
    out_ref[...] = jnp.full(out_ref.shape, jnp.sum(loss_rows), jnp.float32)


def _crd_kernel_stream(alab_ref, clab_ref, npos_ref, f2_ref, f1_ref, out_ref,
                       m_sc, l_sc, s_sc,
                       *, batch, tm, tc, scale, col_pad, row_pad, last_valid):
    """Flash-style streaming over column tiles (online logsumexp)."""
    i = pl.program_id(0)                 # anchor-row tile ("parallel")
    j = pl.program_id(1)                 # contrast-column tile ("arbitrary")
    last_j = pl.num_programs(1) - 1

    @pl.when(j == 0)
    def _():
        m_sc[...] = jnp.full(m_sc.shape, _NEG_BIG, jnp.float32)
        l_sc[...] = jnp.zeros(l_sc.shape, jnp.float32)
        s_sc[...] = jnp.zeros(s_sc.shape, jnp.float32)

    adc = lax.dot_general(
        f2_ref[...], f1_ref[...],
        dimension_numbers=(((1,), (1,)), ((), ())),
        preferred_element_type=jnp.float32)
    if scale != 1.0:
        adc = adc * scale

    # Numerator accumulation needs no column masking (zero-padded features ->
    # exactly-zero logits at padded columns).
    pos = (alab_ref[...] == clab_ref[...]).astype(jnp.float32)
    s_sc[...] += jnp.sum(pos * adc, axis=1, keepdims=True)

    def online_update(a):
        m_new = jnp.maximum(m_sc[...], jnp.max(a, axis=1, keepdims=True))
        l_sc[...] = (l_sc[...] * jnp.exp(m_sc[...] - m_new)
                     + jnp.sum(jnp.exp(a - m_new), axis=1, keepdims=True))
        m_sc[...] = m_new

    if col_pad:
        # Interior tiles: no masking at all (padding lives only in the last
        # tile since Bp - B < 128 <= TC).
        @pl.when(j != last_j)
        def _():
            online_update(adc)

        @pl.when(j == last_j)
        def _():
            ok = lax.broadcasted_iota(jnp.int32, (1, tc), 1) < last_valid
            online_update(jnp.where(ok, adc, _NEG_BIG))
    else:
        online_update(adc)

    @pl.when(j == last_j)
    def _():
        lse = m_sc[...] + jnp.log(l_sc[...])
        loss_rows = _LOSS_SCALE * (s_sc[...] / npos_ref[...] - lse)
        if row_pad:
            row = i * tm + lax.broadcasted_iota(jnp.int32, (tm, 1), 0)
            loss_rows = jnp.where(row < batch, loss_rows, 0.0)
        out_ref[...] = jnp.full(out_ref.shape, jnp.sum(loss_rows), jnp.float32)


# --------------------------------------------------------------------------- #
# Wrapper
# --------------------------------------------------------------------------- #
def crd_loss(feature1, feature2, labels, *, tm=128, tc=256,
             compute_dtype=None, fold_scale=None,
             resident=None, resident_max_cols=1024):
    """CRDLoss.forward: feature1 = contrast, feature2 = anchor ([B, D]); labels [B].

    Returns the scalar loss.  `tm`/`tc` are tile-size requests (sweep per chip:
    v6e/v7x like 128x256; v5e prefers >=256x256).  `resident=None` auto-selects
    the single-column-tile fast path when it fits the VMEM budget.
    """
    B, D = feature1.shape
    assert feature2.shape == (B, D)
    assert labels.shape == (B,)

    compute_dtype = jnp.dtype(compute_dtype or feature1.dtype)
    itemsize = compute_dtype.itemsize

    # Fold 1/T into the anchor features when it costs no extra rounding
    # (f32 inputs: scale in f32, then cast once to the compute dtype).  For
    # already-low-precision inputs the kernel scales the f32 accumulator.
    if fold_scale is None:
        fold_scale = jnp.dtype(feature2.dtype) == jnp.float32
    if fold_scale:
        f2c = (feature2.astype(jnp.float32) * (1.0 / TEMPERATURE)).astype(compute_dtype)
        scale = 1.0
    else:
        f2c = feature2.astype(compute_dtype)
        scale = 1.0 / TEMPERATURE
    f1c = feature1.astype(compute_dtype)

    # ---- padded sizes & tile selection --------------------------------------
    Dp = _round_up(max(D, 1), 128)        # never pad the contraction dim past 128
    Bp = _round_up(B, 128)
    sublane = max(8, 32 // itemsize)      # 8 (f32), 16 (bf16), 32 (int8/fp8)
    TM = _pick_tm(Bp, tm, sublane)
    GR = Bp // TM

    budget = _vmem_budget_bytes()
    # Resident estimate: f1 (double-buffered) + f2 tiles + generous allowance
    # for the compiler's [TM, Bp] f32 elementwise temporaries.
    resident_est = (2 * Bp * Dp * itemsize + 2 * TM * Dp * itemsize
                    + 12 * TM * Bp * 4 + (1 << 20))
    if resident is None:
        resident = (Bp <= resident_max_cols) and (resident_est <= budget)

    # ---- pad inputs (features with zeros, labels with the -1 sentinel) ------
    f1p = jnp.pad(f1c, ((0, Bp - B), (0, Dp - D)))      # contrast features
    f2p = jnp.pad(f2c, ((0, Bp - B), (0, Dp - D)))      # anchor features
    lab = labels.astype(jnp.int32)
    labp = jnp.pad(lab, (0, Bp - B), constant_values=-1)
    alab = labp.reshape(Bp, 1)
    clab = labp.reshape(1, Bp)
    # O(B) wrapper precompute of positive counts (includes the diagonal).
    # TODO(synk): switch to a sort/segment count for very large B.
    npos = jnp.sum(lab[:, None] == lab[None, :], axis=1).astype(jnp.float32)
    nposp = jnp.pad(npos, (0, Bp - B), constant_values=1.0).reshape(Bp, 1)

    col_pad = Bp != B
    row_pad = Bp != B
    out_shape = jax.ShapeDtypeStruct((GR, 1, 128), jnp.float32)
    cost = pl.CostEstimate(
        flops=2 * Bp * Bp * Dp,
        transcendentals=Bp * Bp,
        bytes_accessed=((1 if resident else GR) * Bp * Dp * itemsize
                        + Bp * Dp * itemsize + 3 * Bp * 4 + GR * 128 * 4))

    if resident:
        kern = functools.partial(
            _crd_kernel_resident, batch=B, bp=Bp, tm=TM, scale=scale,
            col_pad=col_pad, row_pad=row_pad)
        grid_spec = pltpu.PrefetchScalarGridSpec(
            num_scalar_prefetch=0, grid=(GR,),
            in_specs=[
                pl.BlockSpec((TM, 1), lambda i: (i, 0)),      # anchor labels
                pl.BlockSpec((1, Bp), lambda i: (0, 0)),      # contrast labels
                pl.BlockSpec((TM, 1), lambda i: (i, 0)),      # positive counts
                pl.BlockSpec((TM, Dp), lambda i: (i, 0)),     # anchor tile
                pl.BlockSpec((Bp, Dp), lambda i: (0, 0)),     # contrast (resident)
            ],
            out_specs=pl.BlockSpec((1, 1, 128), lambda i: (i, 0, 0)),
            scratch_shapes=[])
        dims = ("parallel",)
    else:
        TC = math.gcd(Bp, _round_up(min(tc, Bp), 128))        # lane-aligned, divides Bp
        GC = Bp // TC
        last_valid = B - (GC - 1) * TC                        # real cols in last tile
        kern = functools.partial(
            _crd_kernel_stream, batch=B, tm=TM, tc=TC, scale=scale,
            col_pad=col_pad, row_pad=row_pad, last_valid=last_valid)
        grid_spec = pltpu.PrefetchScalarGridSpec(
            num_scalar_prefetch=0, grid=(GR, GC),
            in_specs=[
                pl.BlockSpec((TM, 1), lambda i, j: (i, 0)),   # anchor labels
                pl.BlockSpec((1, TC), lambda i, j: (0, j)),   # contrast labels
                pl.BlockSpec((TM, 1), lambda i, j: (i, 0)),   # positive counts
                pl.BlockSpec((TM, Dp), lambda i, j: (i, 0)),  # anchor tile
                pl.BlockSpec((TC, Dp), lambda i, j: (j, 0)),  # contrast tile
            ],
            out_specs=pl.BlockSpec((1, 1, 128), lambda i, j: (i, 0, 0)),
            scratch_shapes=[pltpu.VMEM((TM, 1), jnp.float32)] * 3)   # m, l, s
        dims = ("parallel", "arbitrary")

    partial_loss = pl.pallas_call(
        kern,
        grid_spec=grid_spec,
        out_shape=out_shape,
        compiler_params=pltpu.CompilerParams(
            dimension_semantics=dims, vmem_limit_bytes=budget),
        cost_estimate=cost,
    )(alab, clab, nposp, f2p, f1p)

    # Tiny reduction over row tiles; mean over the *real* batch size.
    return jnp.sum(partial_loss[:, 0, 0]) / B


# --------------------------------------------------------------------------- #
# Pure-JAX reference mirroring the PyTorch forward
# --------------------------------------------------------------------------- #
def crd_loss_ref(feature1, feature2, labels):
    T, baseT = TEMPERATURE, BASE_TEMPERATURE
    f1 = feature1.astype(jnp.float32)
    f2 = feature2.astype(jnp.float32)
    labels = labels.reshape(-1, 1)
    mask = (labels == labels.T).astype(jnp.float32)
    adc = jnp.matmul(f2, f1.T, precision=lax.Precision.HIGHEST) / T
    logits_max = jnp.max(adc, axis=1, keepdims=True)
    logits = adc - logits_max
    exp_logits = jnp.exp(logits)
    log_prob = logits - jnp.log(exp_logits.sum(1, keepdims=True))
    mean_log_prob_pos = (mask * log_prob).sum(1) / mask.sum(1)
    loss = -(T / baseT) * mean_log_prob_pos
    return loss.mean()


if __name__ == "__main__":
    # ---- Case 1: module-scale toy shapes, bf16 features, resident path ------
    k1, k2, k3 = jax.random.split(jax.random.PRNGKey(0), 3)
    B, D = 8, 32
    f1 = jax.random.normal(k1, (B, D), jnp.float32).astype(jnp.bfloat16)
    f2 = jax.random.normal(k2, (B, D), jnp.float32).astype(jnp.bfloat16)
    lab = jax.random.randint(k3, (B,), 0, 3, dtype=jnp.int32)
    out1 = crd_loss(f1, f2, lab)
    jax.block_until_ready(out1)
    ref1 = crd_loss_ref(f1, f2, lab)
    assert jnp.allclose(out1, ref1, rtol=2e-4, atol=2e-4), (out1, ref1)

    # ---- Case 2: non-tile-multiple batch, forced streaming path -------------
    # grid (2, 2): exercises the online logsumexp + masked last column tile.
    k4, k5, k6 = jax.random.split(jax.random.PRNGKey(1), 3)
    B2, D2 = 200, 32
    g1 = jax.random.normal(k4, (B2, D2), jnp.float32).astype(jnp.bfloat16)
    g2 = jax.random.normal(k5, (B2, D2), jnp.float32).astype(jnp.bfloat16)
    lab2 = jax.random.randint(k6, (B2,), 0, 5, dtype=jnp.int32)
    out2 = crd_loss(g1, g2, lab2, tm=128, tc=128, resident=False)
    jax.block_until_ready(out2)
    ref2 = crd_loss_ref(g1, g2, lab2)
    assert jnp.allclose(out2, ref2, rtol=2e-4, atol=2e-4), (out2, ref2)

    # ---- Case 3: exact tile multiple, streaming, masking compiled out -------
    k7, k8, k9 = jax.random.split(jax.random.PRNGKey(2), 3)
    B3, D3 = 256, 32
    h1 = jax.random.normal(k7, (B3, D3), jnp.float32).astype(jnp.bfloat16)
    h2 = jax.random.normal(k8, (B3, D3), jnp.float32).astype(jnp.bfloat16)
    lab3 = jax.random.randint(k9, (B3,), 0, 7, dtype=jnp.int32)
    out3 = crd_loss(h1, h2, lab3, tc=128, resident=False)
    jax.block_until_ready(out3)
    ref3 = crd_loss_ref(h1, h2, lab3)
    assert jnp.allclose(out3, ref3, rtol=2e-4, atol=2e-4), (out3, ref3)

    # ---- Case 4: f32 inputs, 1/T folded in the wrapper, bf16 compute --------
    # L2-normalized features (standard CRD/SupCon usage).  Tolerance reflects
    # the bf16 quantization of |logit| <= 1/T, not kernel error.
    ka, kb, kc = jax.random.split(jax.random.PRNGKey(3), 3)
    B4, D4 = 64, 32
    e1 = jax.random.normal(ka, (B4, D4), jnp.float32)
    e2 = jax.random.normal(kb, (B4, D4), jnp.float32)
    e1 = e1 / jnp.linalg.norm(e1, axis=1, keepdims=True)
    e2 = e2 / jnp.linalg.norm(e2, axis=1, keepdims=True)
    lab4 = jax.random.randint(kc, (B4,), 0, 4, dtype=jnp.int32)
    out4 = crd_loss(e1, e2, lab4, compute_dtype=jnp.bfloat16)
    jax.block_until_ready(out4)
    ref4 = crd_loss_ref(e1, e2, lab4)
    assert jnp.allclose(out4, ref4, rtol=5e-2, atol=5e-2), (out4, ref4)

    print("KERNEL_OK")
</pallas_src>

<mosaic_0001>
module attributes {stable_mosaic.version = 11 : i64} {
  func.func @_crd_kernel_resident(%arg0: i32, %arg1: memref<64x1xi32, #tpu.memory_space<vmem>>, %arg2: memref<1x128xi32, #tpu.memory_space<vmem>>, %arg3: memref<64x1xf32, #tpu.memory_space<vmem>>, %arg4: memref<64x128xbf16, #tpu.memory_space<vmem>>, %arg5: memref<128x128xbf16, #tpu.memory_space<vmem>>, %arg6: memref<1x1x128xf32, #tpu.memory_space<vmem>>) attributes {dimension_semantics = [#tpu.dimension_semantics<parallel>], iteration_bounds = array<i64: 2>, scalar_prefetch = 0 : i64, scratch_operands = 0 : i64, tpu.core_type = #tpu.core_type<tc>, window_params = [{transform_indices = @transform_0, window_bounds = array<i64: 64, 1>}, {pipeline_mode = #tpu.pipeline_mode<synchronous>, transform_indices = @transform_1, window_bounds = array<i64: 1, 128>}, {transform_indices = @transform_2, window_bounds = array<i64: 64, 1>}, {transform_indices = @transform_3, window_bounds = array<i64: 64, 128>}, {pipeline_mode = #tpu.pipeline_mode<synchronous>, transform_indices = @transform_4, window_bounds = array<i64: 128, 128>}, {transform_indices = @transform_5, window_bounds = array<i64: 1, 1, 128>}]} {
    %c0 = arith.constant 0 : index
    %c0_0 = arith.constant 0 : index
    %0 = vector.load %arg4[%c0, %c0_0] : memref<64x128xbf16, #tpu.memory_space<vmem>>, vector<64x128xbf16>
    %c0_1 = arith.constant 0 : index
    %c0_2 = arith.constant 0 : index
    %1 = vector.load %arg5[%c0_1, %c0_2] : memref<128x128xbf16, #tpu.memory_space<vmem>>, vector<128x128xbf16>
    %cst = arith.constant dense<0.000000e+00> : vector<64x128xf32>
    %2 = tpu.matmul %0, %1, %cst {dimension_numbers = #tpu.dot_dimension_numbers<[1], [1], [0], [0], [0, 0, 1, 0], [], []>} : vector<64x128xbf16>, vector<128x128xbf16>, vector<64x128xf32> -> vector<64x128xf32>
    %cst_3 = arith.constant 14.2857141 : f32
    %3 = vector.broadcast %cst_3 : f32 to vector<64x128xf32>
    %4 = arith.mulf %2, %3 : vector<64x128xf32>
    %c0_4 = arith.constant 0 : index
    %c0_5 = arith.constant 0 : index
    %5 = vector.load %arg1[%c0_4, %c0_5] : memref<64x1xi32, #tpu.memory_space<vmem>>, vector<64x1xi32>
    %c0_6 = arith.constant 0 : index
    %c0_7 = arith.constant 0 : index
    %6 = vector.load %arg2[%c0_6, %c0_7] : memref<1x128xi32, #tpu.memory_space<vmem>>, vector<1x128xi32>
    %7 = vector.broadcast %5 : vector<64x1xi32> to vector<64x128xi32>
    %8 = vector.broadcast %6 : vector<1x128xi32> to vector<64x128xi32>
    %9 = arith.cmpi eq, %7, %8 : vector<64x128xi32>
    %10 = arith.extui %9 : vector<64x128xi1> to vector<64x128xi32>
    %11 = arith.sitofp %10 : vector<64x128xi32> to vector<64x128xf32>
    %12 = arith.mulf %11, %4 : vector<64x128xf32>
    %cst_8 = arith.constant dense<0.000000e+00> : vector<64xf32>
    %13 = vector.multi_reduction <add>, %12, %cst_8 [1] : vector<64x128xf32> to vector<64xf32>
    %14 = vector.shape_cast %13 : vector<64xf32> to vector<64x1xf32>
    %15 = tpu.iota {dimensions = array<i32: 1>} : vector<1x128xi32>
    %c8_i32 = arith.constant 8 : i32
    %16 = vector.broadcast %c8_i32 : i32 to vector<1x128xi32>
    %17 = arith.cmpi slt, %15, %16 : vector<1x128xi32>
    %cst_9 = arith.constant -1.000000e+30 : f32
    %18 = vector.shape_cast %17 : vector<1x128xi1> to vector<1x128xi1>
    %19 = vector.broadcast %18 : vector<1x128xi1> to vector<64x128xi1>
    %20 = vector.broadcast %cst_9 : f32 to vector<64x128xf32>
    %21 = arith.select %19, %4, %20 : vector<64x128xi1>, vector<64x128xf32>
    %cst_10 = arith.constant dense<0xFF800000> : vector<64xf32>
    %22 = vector.multi_reduction <maximumf>, %21, %cst_10 [1] : vector<64x128xf32> to vector<64xf32>
    %23 = vector.shape_cast %22 : vector<64xf32> to vector<64x1xf32>
    %24 = vector.broadcast %23 : vector<64x1xf32> to vector<64x128xf32>
    %25 = arith.subf %21, %24 : vector<64x128xf32>
    %26 = math.exp %25 : vector<64x128xf32>
    %cst_11 = arith.constant dense<0.000000e+00> : vector<64xf32>
    %27 = vector.multi_reduction <add>, %26, %cst_11 [1] : vector<64x128xf32> to vector<64xf32>
    %28 = vector.shape_cast %27 : vector<64xf32> to vector<64x1xf32>
    %29 = math.log %28 : vector<64x1xf32>
    %30 = arith.addf %23, %29 : vector<64x1xf32>
    %c0_12 = arith.constant 0 : index
    %c0_13 = arith.constant 0 : index
    %31 = vector.load %arg3[%c0_12, %c0_13] : memref<64x1xf32, #tpu.memory_space<vmem>>, vector<64x1xf32>
    %32 = arith.divf %14, %31 : vector<64x1xf32>
    %33 = arith.subf %32, %30 : vector<64x1xf32>
    %cst_14 = arith.constant -1.000000e+00 : f32
    %34 = vector.broadcast %cst_14 : f32 to vector<64x1xf32>
    %35 = arith.mulf %34, %33 : vector<64x1xf32>
    %c64_i32 = arith.constant 64 : i32
    %36 = arith.muli %arg0, %c64_i32 : i32
    %37 = tpu.iota {dimensions = array<i32: 0>} : vector<64x1xi32>
    %38 = vector.broadcast %36 : i32 to vector<64x1xi32>
    %39 = arith.addi %38, %37 : vector<64x1xi32>
    %c8_i32_15 = arith.constant 8 : i32
    %40 = vector.broadcast %c8_i32_15 : i32 to vector<64x1xi32>
    %41 = arith.cmpi slt, %39, %40 : vector<64x1xi32>
    %cst_16 = arith.constant 0.000000e+00 : f32
    %42 = vector.broadcast %cst_16 : f32 to vector<64x1xf32>
    %43 = arith.select %41, %35, %42 : vector<64x1xi1>, vector<64x1xf32>
    %44 = vector.shape_cast %43 : vector<64x1xf32> to vector<1x64x1xf32>
    %cst_17 = arith.constant dense<0.000000e+00> : vector<1xf32>
    %45 = vector.multi_reduction <add>, %44, %cst_17 [1, 2] : vector<1x64x1xf32> to vector<1xf32>
    %46 = vector.shape_cast %45 : vector<1xf32> to vector<1x1x1xf32>
    %47 = vector.extract %46[0, 0, 0] : f32 from vector<1x1x1xf32>
    %48 = vector.broadcast %47 : f32 to vector<1x1x128xf32>
    %c0_18 = arith.constant 0 : index
    %c0_19 = arith.constant 0 : index
    %c0_20 = arith.constant 0 : index
    %49 = vector.load %arg6[%c0_18, %c0_19, %c0_20] : memref<1x1x128xf32, #tpu.memory_space<vmem>>, vector<1x1x128xf32>
    tpu.vector_store %arg6[%c0_18, %c0_19, %c0_20], %48 {strides = array<i32>} : memref<1x1x128xf32, #tpu.memory_space<vmem>>, vector<1x1x128xf32>,
    return
  }
  func.func @transform_0(%arg0: i32) -> (i32, i32) {
    %c0_i32 = arith.constant 0 : i32
    %c0_i32_0 = arith.constant 0 : i32
    return %arg0, %c0_i32 : i32, i32
  }
  func.func @transform_1(%arg0: i32) -> (i32, i32) {
    %c0_i32 = arith.constant 0 : i32
    %c0_i32_0 = arith.constant 0 : i32
    %c0_i32_1 = arith.constant 0 : i32
    return %c0_i32, %c0_i32_0 : i32, i32
  }
  func.func @transform_2(%arg0: i32) -> (i32, i32) {
    %c0_i32 = arith.constant 0 : i32
    %c0_i32_0 = arith.constant 0 : i32
    return %arg0, %c0_i32 : i32, i32
  }
  func.func @transform_3(%arg0: i32) -> (i32, i32) {
    %c0_i32 = arith.constant 0 : i32
    %c0_i32_0 = arith.constant 0 : i32
    return %arg0, %c0_i32 : i32, i32
  }
  func.func @transform_4(%arg0: i32) -> (i32, i32) {
    %c0_i32 = arith.constant 0 : i32
    %c0_i32_0 = arith.constant 0 : i32
    %c0_i32_1 = arith.constant 0 : i32
    return %c0_i32, %c0_i32_0 : i32, i32
  }
  func.func @transform_5(%arg0: i32) -> (i32, i32, i32) {
    %c0_i32 = arith.constant 0 : i32
    %c0_i32_0 = arith.constant 0 : i32
    %c0_i32_1 = arith.constant 0 : i32
    return %arg0, %c0_i32, %c0_i32_0 : i32, i32, i32
  }
}

</mosaic_0001>

<llo_original>
// kernel: tpu_custom_call.1
$region0: #{tpu_custom_call.1}
  #allocation0 [shape = 'u32[]', space=smem, size = 0x4, offset = 0x4, fixed_abs, tag = 'smem constant byte address 0x4 - core index']
  #allocation1 [shape = 'u32[144,128]{1,0:T(1,128)}', space=vmem, size = 0x12000, scoped, tag = 'internal scratch']
  %s0 = inlined_call_operand.vmem [shape: s32[128,1], index: 0, kind: input, shape index: {}]
  %s1 = inlined_call_operand.vmem [shape: s32[1,128], index: 1, kind: input, shape index: {}]
  %s2 = inlined_call_operand.vmem [shape: f32[128,1], index: 2, kind: input, shape index: {}]
  %s3 = inlined_call_operand.vmem [shape: bf16[128,128], index: 3, kind: input, shape index: {}]
  %s4 = inlined_call_operand.vmem [shape: bf16[128,128], index: 4, kind: input, shape index: {}]
  %s5 = inlined_call_operand.hbm [shape: f32[2,1,128], index: 5, kind: output, shape index: {}]
  %s6 = sld [smem:[#allocation0]]
  $region53: #{tpu_custom_call.1} parent=0
    _
  %s8 = ssub.s32 1, %s6
  %s9 = scalar_select 0, %s8, %s6
  $region1: #{tpu_custom_call.1} parent=0
    #allocation2 [shape = 'u8[1024]{0}', space=vmem, size = 0x400, scoped, tag = 'output window, operand 0']
    #allocation3 [shape = 's32[2]{0}', space=sflag, size = 0x8, scoped, tag = 'scoped memory for tpu_custom_call.1']
    %10 = vsyncpa [#allocation3], 0
    %s11 = scalar_lea.sflag [#allocation3], 1
    %12 = vsyncpa %s11, 0
    loop: start=0, step=1, limit=4
    $region2: #{tpu_custom_call.1} parent=1 // loop_pre_header
      _
    $region3: #{tpu_custom_call.1} parent=1 // loop_header
      %s14 = sphi 0, %s18
      %p15 = scmp.ge.s32.totalorder %s14, 4
      %s24 = sphi 0, %s26
      %s27 = sphi 0, %s24
      %s28 = sphi 0, %s27
      %s44 = sphi 0, %s28
      %s48 = sphi 0, %s48
      %s50 = sphi 0, %s48
      %s51 = sphi 0, %s50
      %s65 = sphi 0, %s51
      %s71 = sphi 0, %s73
      %s74 = sphi 0, %s71
      %s75 = sphi 0, %s74
      %s91 = sphi 0, %s75
      %s97 = sphi 0, %s99
      %s100 = sphi 0, %s97
      %s101 = sphi 0, %s100
      %s117 = sphi 0, %s101
      %s121 = sphi 0, %s121
      %s123 = sphi 0, %s121
      %s124 = sphi 0, %s123
      %s138 = sphi 0, %s124
      %s144 = sphi 0, %s146
      %s147 = sphi 0, %s144
      %s148 = sphi 0, %s147
      %s164 = sphi 0, %s148
    $region4: #{tpu_custom_call.1} parent=1 // loop_header_branch
      %17 = sbr.rel (%p15) target = $region8
    $region5: #{tpu_custom_call.1} parent=1 // loop_body
      %s19 = ssub.s32 %s14, 1
      %s20 = ssub.s32 %s14, 2
      %s21 = sadd.s32 %s14, 1
      %s22 = ssub.s32 %s14, %s21
      %p23 = scmp.eq.s32.totalorder %s22, 0
      %s25 = sadd.s32 %s24, 1
      %s26 = scalar_select %p23, %s24, %s25
      %p29 = pneg %p23
      %p30 = scmp.eq.s32.totalorder %s14, 1
      %p31 = por %p29, %p30
      %p32 = scmp.ne.s32.totalorder %s24, %s27
      %p33 = scmp.eq.s32.totalorder %s14, 0
      %p34 = por %p32, %p33
      %p35 = scmp.ne.s32.totalorder %s24, %s27
      %p36 = scmp.eq.s32.totalorder %s19, 1
      %p37 = por %p35, %p36
      %p38 = scmp.ne.s32.totalorder %s27, %s28
      %p39 = scmp.eq.s32.totalorder %s19, 0
      %p40 = por %p38, %p39
      %p41 = scmp.ne.s32.totalorder %s27, %s28
      %p42 = scmp.eq.s32.totalorder %s20, 1
      %p43 = por %p41, %p42
      %p45 = scmp.ne.s32.totalorder %s28, %s44
      %p46 = scmp.eq.s32.totalorder %s20, 0
      %p47 = por %p45, %p46
      %s49 = sadd.s32 %s48, 1
      %p52 = scmp.eq.s32.totalorder %s14, 1
      %p53 = scmp.ne.s32.totalorder %s48, %s50
      %p54 = scmp.eq.s32.totalorder %s14, 0
      %p55 = por %p53, %p54
      %p56 = scmp.ne.s32.totalorder %s48, %s50
      %p57 = scmp.eq.s32.totalorder %s19, 1
      %p58 = por %p56, %p57
      %p59 = scmp.ne.s32.totalorder %s50, %s51
      %p60 = scmp.eq.s32.totalorder %s19, 0
      %p61 = por %p59, %p60
      %p62 = scmp.ne.s32.totalorder %s50, %s51
      %p63 = scmp.eq.s32.totalorder %s20, 1
      %p64 = por %p62, %p63
      %p66 = scmp.ne.s32.totalorder %s51, %s65
      %p67 = scmp.eq.s32.totalorder %s20, 0
      %p68 = por %p66, %p67
      %s69 = ssub.s32 %s14, %s21
      %p70 = scmp.eq.s32.totalorder %s69, 0
      %s72 = sadd.s32 %s71, 1
      %s73 = scalar_select %p70, %s71, %s72
      %p76 = pneg %p70
      %p77 = scmp.eq.s32.totalorder %s14, 1
      %p78 = por %p76, %p77
      %p79 = scmp.ne.s32.totalorder %s71, %s74
      %p80 = scmp.eq.s32.totalorder %s14, 0
      %p81 = por %p79, %p80
      %p82 = scmp.ne.s32.totalorder %s71, %s74
      %p83 = scmp.eq.s32.totalorder %s19, 1
      %p84 = por %p82, %p83
      %p85 = scmp.ne.s32.totalorder %s74, %s75
      %p86 = scmp.eq.s32.totalorder %s19, 0
      %p87 = por %p85, %p86
      %p88 = scmp.ne.s32.totalorder %s74, %s75
      %p89 = scmp.eq.s32.totalorder %s20, 1
      %p90 = por %p88, %p89
      %p92 = scmp.ne.s32.totalorder %s75, %s91
      %p93 = scmp.eq.s32.totalorder %s20, 0
      %p94 = por %p92, %p93
      %s95 = ssub.s32 %s14, %s21
      %p96 = scmp.eq.s32.totalorder %s95, 0
      %s98 = sadd.s32 %s97, 1
      %s99 = scalar_select %p96, %s97, %s98
      %p102 = pneg %p96
      %p103 = scmp.eq.s32.totalorder %s14, 1
      %p104 = por %p102, %p103
      %p105 = scmp.ne.s32.totalorder %s97, %s100
      %p106 = scmp.eq.s32.totalorder %s14, 0
      %p107 = por %p105, %p106
      %p108 = scmp.ne.s32.totalorder %s97, %s100
      %p109 = scmp.eq.s32.totalorder %s19, 1
      %p110 = por %p108, %p109
      %p111 = scmp.ne.s32.totalorder %s100, %s101
      %p112 = scmp.eq.s32.totalorder %s19, 0
      %p113 = por %p111, %p112
      %p114 = scmp.ne.s32.totalorder %s100, %s101
      %p115 = scmp.eq.s32.totalorder %s20, 1
      %p116 = por %p114, %p115
      %p118 = scmp.ne.s32.totalorder %s101, %s117
      %p119 = scmp.eq.s32.totalorder %s20, 0
      %p120 = por %p118, %p119
      %s122 = sadd.s32 %s121, 1
      %p125 = scmp.eq.s32.totalorder %s14, 1
      %p126 = scmp.ne.s32.totalorder %s121, %s123
      %p127 = scmp.eq.s32.totalorder %s14, 0
      %p128 = por %p126, %p127
      %p129 = scmp.ne.s32.totalorder %s121, %s123
      %p130 = scmp.eq.s32.totalorder %s19, 1
      %p131 = por %p129, %p130
      %p132 = scmp.ne.s32.totalorder %s123, %s124
      %p133 = scmp.eq.s32.totalorder %s19, 0
      %p134 = por %p132, %p133
      %p135 = scmp.ne.s32.totalorder %s123, %s124
      %p136 = scmp.eq.s32.totalorder %s20, 1
      %p137 = por %p135, %p136
      %p139 = scmp.ne.s32.totalorder %s124, %s138
      %p140 = scmp.eq.s32.totalorder %s20, 0
      %p141 = por %p139, %p140
      %s142 = ssub.s32 %s14, %s21
      %p143 = scmp.eq.s32.totalorder %s142, 0
      %s145 = sadd.s32 %s144, 1
      %s146 = scalar_select %p143, %s144, %s145
      %p149 = pneg %p143
      %p150 = scmp.eq.s32.totalorder %s14, 1
      %p151 = por %p149, %p150
      %p152 = scmp.ne.s32.totalorder %s144, %s147
      %p153 = scmp.eq.s32.totalorder %s14, 0
      %p154 = por %p152, %p153
      %p155 = scmp.ne.s32.totalorder %s144, %s147
      %p156 = scmp.eq.s32.totalorder %s19, 1
      %p157 = por %p155, %p156
      %p158 = scmp.ne.s32.totalorder %s147, %s148
      %p159 = scmp.eq.s32.totalorder %s19, 0
      %p160 = por %p158, %p159
      %p161 = scmp.ne.s32.totalorder %s147, %s148
      %p162 = scmp.eq.s32.totalorder %s20, 1
      %p163 = por %p161, %p162
      %p165 = scmp.ne.s32.totalorder %s148, %s164
      %p166 = scmp.eq.s32.totalorder %s20, 0
      %p167 = por %p165, %p166
      %p168 = scmp.le.s32.totalorder 1, %s14
      %p169 = scmp.lt.s32.totalorder %s14, 3
      %p170 = pnand %p168, %p169
      %p171 = pneg %p170
      // Predicated region
      $region9: #{tpu_custom_call.1} parent=5 // pred_check
        _
      $region10: #{tpu_custom_call.1} parent=5 // pred_check_branch
        %173 = sbr.rel (%p170) target = $region12
      $region11: #{tpu_custom_call.1} parent=5 // pred_region
        %s174 = ssub.s32 %s14, 1
        // Predicated region
        $region13: #{tpu_custom_call.1} parent=11 // pred_check
          %p175 = pneg %p61
        $region14: #{tpu_custom_call.1} parent=11 // pred_check_branch
          %177 = sbr.rel (%p175) target = $region16
        $region15: #{tpu_custom_call.1} parent=11 // pred_region
          _
        $region16: #{tpu_custom_call.1} parent=11 // pred_fallthru
          _
        // Predicated region
        $region17: #{tpu_custom_call.1} parent=11 // pred_check
          %p178 = pneg %p134
        $region18: #{tpu_custom_call.1} parent=11 // pred_check_branch
          %180 = sbr.rel (%p178) target = $region20
        $region19: #{tpu_custom_call.1} parent=11 // pred_region
          _
        $region20: #{tpu_custom_call.1} parent=11 // pred_fallthru
          _
      $region12: #{tpu_custom_call.1} parent=5 // pred_fallthru
        _
      %p181 = scmp.lt.s32.totalorder %s14, 2
      // Predicated region
      $region21: #{tpu_custom_call.1} parent=5 // pred_check
        %p182 = pneg %p181
      $region22: #{tpu_custom_call.1} parent=5 // pred_check_branch
        %184 = sbr.rel (%p182) target = $region24
      $region23: #{tpu_custom_call.1} parent=5 // pred_region
        // Predicated region
        $region25: #{tpu_custom_call.1} parent=23 // pred_check
          %p185 = pneg %p34
        $region26: #{tpu_custom_call.1} parent=23 // pred_check_branch
          %187 = sbr.rel (%p185) target = $region28
        $region27: #{tpu_custom_call.1} parent=23 // pred_region
          %s188 = smul.u32 8, %s14
          %p189 = scmp.lt.s32.totalorder %s188, 15
          %s190 = scalar_select %p189, %s188, 15
          %s191 = smul.addr %s190, 8
          %s192 = scalar_lea.vmem %s0, %s191
          %s193 = smul.u32 8, %s14
        $region28: #{tpu_custom_call.1} parent=23 // pred_fallthru
          _
        // Predicated region
        $region29: #{tpu_custom_call.1} parent=23 // pred_check
          %p194 = pneg %p81
        $region30: #{tpu_custom_call.1} parent=23 // pred_check_branch
          %196 = sbr.rel (%p194) target = $region32
        $region31: #{tpu_custom_call.1} parent=23 // pred_region
          %s197 = smul.u32 8, %s14
          %p198 = scmp.lt.s32.totalorder %s197, 15
          %s199 = scalar_select %p198, %s197, 15
          %s200 = smul.addr %s199, 8
          %s201 = scalar_lea.vmem %s2, %s200
          %s202 = smul.u32 8, %s14
        $region32: #{tpu_custom_call.1} parent=23 // pred_fallthru
          _
        // Predicated region
        $region33: #{tpu_custom_call.1} parent=23 // pred_check
          %p203 = pneg %p107
        $region34: #{tpu_custom_call.1} parent=23 // pred_check_branch
          %205 = sbr.rel (%p203) target = $region36
        $region35: #{tpu_custom_call.1} parent=23 // pred_region
          %s206 = smul.u32 8, %s14
          %p207 = scmp.lt.s32.totalorder %s206, 15
          %s208 = scalar_select %p207, %s206, 15
          %s209 = smul.addr %s208, 4
          %s210 = scalar_lea.vmem %s3, %s209
          %s211 = smul.u32 8, %s14
        $region36: #{tpu_custom_call.1} parent=23 // pred_fallthru
          _
      $region24: #{tpu_custom_call.1} parent=5 // pred_fallthru
        _
      %p212 = scmp.le.s32.totalorder 1, %s14
      %p213 = scmp.lt.s32.totalorder %s14, 3
      %p214 = pnand %p212, %p213
      %p215 = pneg %p214
      // Predicated region
      $region37: #{tpu_custom_call.1} parent=5 // pred_check
        _
      $region38: #{tpu_custom_call.1} parent=5 // pred_check_branch
        %217 = sbr.rel (%p214) target = $region40
      $region39: #{tpu_custom_call.1} parent=5 // pred_region
        %s218 = ssub.s32 %s14, 1
        %s219 = smul.u32 8, %s19
        %p220 = scmp.lt.s32.totalorder %s219, 15
        %s221 = scalar_select %p220, %s219, 15
        %s222 = smul.addr %s221, 8
        %s223 = scalar_lea.vmem %s0, %s222
        %p224 = pneg %p40
        %p225 = pneg %p37
        %p226 = pneg %p61
        %p227 = pneg %p58
        %s228 = smul.u32 8, %s19
        %p229 = scmp.lt.s32.totalorder %s228, 15
        %s230 = scalar_select %p229, %s228, 15
        %s231 = smul.addr %s230, 8
        %s232 = scalar_lea.vmem %s2, %s231
        %p233 = pneg %p87
        %p234 = pneg %p84
        %s235 = smul.u32 8, %s19
        %p236 = scmp.lt.s32.totalorder %s235, 15
        %s237 = scalar_select %p236, %s235, 15
        %s238 = smul.addr %s237, 4
        %s239 = scalar_lea.vmem %s3, %s238
        %p240 = pneg %p113
        %p241 = pneg %p110
        %p242 = pneg %p134
        %p243 = pneg %p131
        %p244 = pneg %p160
        %p245 = pneg %p157
        %s246 = sand.u32 %s147, 1
        %s247 = scalar_lea.sflag [#allocation3], %s246
        %s248 = sand.u32 %s147, 1
        %s249 = scalar_lea.vmem [#allocation2], %s248
        %s250 = smul.u32 8, %s19
        %p251 = scmp.lt.s32.totalorder %s250, 15
        %s252 = scalar_select %p251, %s250, 15
        %s253 = smul.addr %s252, 8
        %s254 = scalar_lea.vmem %s0, %s253
        %s255 = smul.u32 8, %s19
        %s256 = smul.u32 8, %s19
        %p257 = scmp.lt.s32.totalorder %s256, 15
        %s258 = scalar_select %p257, %s256, 15
        %s259 = smul.addr %s258, 8
        %s260 = scalar_lea.vmem %s2, %s259
        %s261 = smul.u32 8, %s19
        %s262 = smul.u32 8, %s19
        %p263 = scmp.lt.s32.totalorder %s262, 15
        %s264 = scalar_select %p263, %s262, 15
        %s265 = smul.addr %s264, 4
        %s266 = scalar_lea.vmem %s3, %s265
        %s267 = smul.u32 8, %s19
        %v269 = vld [vmem:[%s266] sm:$0xf]
        %v270 = vld [vmem:[%s266 + $0x4] sm:$0xf]
        %v271 = vld [vmem:[%s266 + $0x8] sm:$0xf]
        %v272 = vld [vmem:[%s266 + $0xc] sm:$0xf]
        %v273 = vld [vmem:[%s266 + $0x10] sm:$0xf]
        %v274 = vld [vmem:[%s266 + $0x14] sm:$0xf]
        %v275 = vld [vmem:[%s266 + $0x18] sm:$0xf]
        %v276 = vld [vmem:[%s266 + $0x1c] sm:$0xf]
        %v277 = vld [vmem:[%s4] sm:$0xf]
        %v278 = vld [vmem:[%s4 + $0x4] sm:$0xf]
        %v279 = vld [vmem:[%s4 + $0x8] sm:$0xf]
        %v280 = vld [vmem:[%s4 + $0xc] sm:$0xf]
        %v281 = vld [vmem:[%s4 + $0x10] sm:$0xf]
        %v282 = vld [vmem:[%s4 + $0x14] sm:$0xf]
        %v283 = vld [vmem:[%s4 + $0x18] sm:$0xf]
        %v284 = vld [vmem:[%s4 + $0x1c] sm:$0xf]
        %v285 = vld [vmem:[%s4 + $0x20] sm:$0xf]
        %v286 = vld [vmem:[%s4 + $0x24] sm:$0xf]
        %v287 = vld [vmem:[%s4 + $0x28] sm:$0xf]
        %v288 = vld [vmem:[%s4 + $0x2c] sm:$0xf]
        %v289 = vld [vmem:[%s4 + $0x30] sm:$0xf]
        %v290 = vld [vmem:[%s4 + $0x34] sm:$0xf]
        %v291 = vld [vmem:[%s4 + $0x38] sm:$0xf]
        %v292 = vld [vmem:[%s4 + $0x3c] sm:$0xf]
        %v301 = vunpack.c.l.b16 %v269
        %v302 = vunpack.c.l.b16 %v270
        %v303 = vunpack.c.l.b16 %v271
        %v304 = vunpack.c.l.b16 %v272
        %v305 = vunpack.c.l.b16 %v273
        %v306 = vunpack.c.l.b16 %v274
        %v307 = vunpack.c.l.b16 %v275
        %v308 = vunpack.c.l.b16 %v276
        %v309 = vpack.c.b16 %v302, %v301
        %v310 = vpack.c.b16 %v304, %v303
        %v311 = vpack.c.b16 %v306, %v305
        %v312 = vpack.c.b16 %v308, %v307
        %v333 = vunpack.c.l.b16 %v277
        %v334 = vunpack.c.l.b16 %v278
        %v335 = vunpack.c.l.b16 %v279
        %v336 = vunpack.c.l.b16 %v280
        %v337 = vunpack.c.l.b16 %v281
        %v338 = vunpack.c.l.b16 %v282
        %v339 = vunpack.c.l.b16 %v283
        %v340 = vunpack.c.l.b16 %v284
        %v341 = vunpack.c.l.b16 %v285
        %v342 = vunpack.c.l.b16 %v286
        %v343 = vunpack.c.l.b16 %v287
        %v344 = vunpack.c.l.b16 %v288
        %v345 = vunpack.c.l.b16 %v289
        %v346 = vunpack.c.l.b16 %v290
        %v347 = vunpack.c.l.b16 %v291
        %v348 = vunpack.c.l.b16 %v292
        %v349 = vpack.c.b16 %v334, %v333
        %v350 = vpack.c.b16 %v336, %v335
        %v351 = vpack.c.b16 %v338, %v337
        %v352 = vpack.c.b16 %v340, %v339
        %v353 = vpack.c.b16 %v342, %v341
        %v354 = vpack.c.b16 %v344, %v343
        %v355 = vpack.c.b16 %v346, %v345
        %v356 = vpack.c.b16 %v348, %v347
        %365 = vmatprep.subr.bf16.mxu0 0
        %366 = vmatpush1.bf16.xpose.msra.mxu0 %v349
        %367 = vmatprep.subr.bf16.mxu0 0
        %368 = vmatpush1.bf16.xpose.msra.mxu0 %v350
        %369 = vmatprep.subr.bf16.mxu0 0
        %370 = vmatpush1.bf16.xpose.msra.mxu0 %v351
        %371 = vmatprep.subr.bf16.mxu0 0
        %372 = vmatpush1.bf16.xpose.msra.mxu0 %v352
        %373 = vmatprep.subr.bf16.mxu0 0
        %374 = vmatpush1.bf16.xpose.msra.mxu0 %v353
        %375 = vmatprep.subr.bf16.mxu0 0
        %376 = vmatpush1.bf16.xpose.msra.mxu0 %v354
        %377 = vmatprep.subr.bf16.mxu0 0
        %378 = vmatpush1.bf16.xpose.msra.mxu0 %v355
        %379 = vmatprep.subr.bf16.mxu0 0
        %380 = vmatpush1.bf16.xpose.msra.mxu0 %v356
        %381 = vmatprep.subr.bf16.mxu0 0
        %382 = vmatpush1.bf16.xpose.msra.mxu0 0
        %383 = vmatprep.subr.bf16.mxu0 0
        %384 = vmatpush1.bf16.xpose.msra.mxu0 0
        %385 = vmatprep.subr.bf16.mxu0 0
        %386 = vmatpush1.bf16.xpose.msra.mxu0 0
        %387 = vmatprep.subr.bf16.mxu0 0
        %388 = vmatpush1.bf16.xpose.msra.mxu0 0
        %389 = vmatprep.subr.bf16.mxu0 0
        %390 = vmatpush1.bf16.xpose.msra.mxu0 0
        %391 = vmatprep.subr.bf16.mxu0 0
        %392 = vmatpush1.bf16.xpose.msra.mxu0 0
        %393 = vmatprep.subr.bf16.mxu0 0
        %394 = vmatpush1.bf16.xpose.msra.mxu0 0
        %395 = vmatprep.subr.bf16.mxu0 0
        %396 = vmatpush1.bf16.xpose.msra.mxu0 0
        %397 = vmatprep.mubr.bf16.mxu0 0
        %398 = vmatmul.mubr.bf16.gmra.mrb[0].mxu0 %v309
        %v399 = vpop.f32.mrb[0].mxu0
        %v400 = vadd.f32 0.0, %v399
        %v401 = vpop.f32.mrb[0].mxu0
        %v402 = vpop.f32.mrb[0].mxu0
        %v403 = vadd.f32 0.0, %v402
        %v404 = vpop.f32.mrb[0].mxu0
        %405 = vmatprep.mubr.bf16.mxu0 0
        %406 = vmatmul.mubr.bf16.gmra.mrb[0].mxu0 %v310
        %v407 = vpop.f32.mrb[0].mxu0
        %v408 = vadd.f32 0.0, %v407
        %v409 = vpop.f32.mrb[0].mxu0
        %v410 = vpop.f32.mrb[0].mxu0
        %v411 = vadd.f32 0.0, %v410
        %v412 = vpop.f32.mrb[0].mxu0
        %413 = vmatprep.mubr.bf16.mxu0 0
        %414 = vmatmul.mubr.bf16.gmra.mrb[0].mxu0 %v311
        %v415 = vpop.f32.mrb[0].mxu0
        %v416 = vadd.f32 0.0, %v415
        %v417 = vpop.f32.mrb[0].mxu0
        %v418 = vpop.f32.mrb[0].mxu0
        %v419 = vadd.f32 0.0, %v418
        %v420 = vpop.f32.mrb[0].mxu0
        %421 = vmatprep.mubr.bf16.mxu0 0
        %422 = vmatmul.mubr.bf16.gmra.mrb[0].mxu0 %v312
        %v423 = vpop.f32.mrb[0].mxu0
        %v424 = vadd.f32 0.0, %v423
        %v425 = vpop.f32.mrb[0].mxu0
        %v426 = vpop.f32.mrb[0].mxu0
        %v427 = vadd.f32 0.0, %v426
        %v428 = vpop.f32.mrb[0].mxu0
        %429 = vdwg.mxu0
        %v430 = vmul.f32 %v400, 14.285714
        %v431 = vmul.f32 %v403, 14.285714
        %v432 = vmul.f32 %v408, 14.285714
        %v433 = vmul.f32 %v411, 14.285714
        %v434 = vmul.f32 %v416, 14.285714
        %v435 = vmul.f32 %v419, 14.285714
        %v436 = vmul.f32 %v424, 14.285714
        %v437 = vmul.f32 %v427, 14.285714
        %v438 = vld [vmem:[%s254] sm:$0xff]
        %v439 = vld [vmem:[%s254 + $0x8] sm:$0xff]
        %v440 = vld [vmem:[%s254 + $0x10] sm:$0xff]
        %v441 = vld [vmem:[%s254 + $0x18] sm:$0xff]
        %v442 = vld [vmem:[%s254 + $0x20] sm:$0xff]
        %v443 = vld [vmem:[%s254 + $0x28] sm:$0xff]
        %v444 = vld [vmem:[%s254 + $0x30] sm:$0xff]
        %v445 = vld [vmem:[%s254 + $0x38] sm:$0xff]
        %v446 = vld [vmem:[%s1] sm:$0x1]
        %447 = vset.pattern.permute.xlu0 0
        %448 = vperm.xlu0 %447, %v438
        %v449 = vpop.permute.xlu0 %448
        %450 = vset.pattern.permute.xlu0 0
        %451 = vperm.xlu0 %450, %v439
        %v452 = vpop.permute.xlu0 %451
        %453 = vset.pattern.permute.xlu0 0
        %454 = vperm.xlu0 %453, %v440
        %v455 = vpop.permute.xlu0 %454
        %456 = vset.pattern.permute.xlu0 0
        %457 = vperm.xlu0 %456, %v441
        %v458 = vpop.permute.xlu0 %457
        %459 = vset.pattern.permute.xlu0 0
        %460 = vperm.xlu0 %459, %v442
        %v461 = vpop.permute.xlu0 %460
        %462 = vset.pattern.permute.xlu0 0
        %463 = vperm.xlu0 %462, %v443
        %v464 = vpop.permute.xlu0 %463
        %465 = vset.pattern.permute.xlu0 0
        %466 = vperm.xlu0 %465, %v444
        %v467 = vpop.permute.xlu0 %466
        %468 = vset.pattern.permute.xlu0 0
        %469 = vperm.xlu0 %468, %v445
        %v470 = vpop.permute.xlu0 %469
        %v471 = vlaneseq
        %v472 = vshrl.u32 %v471, 7
        %v473 = vsub.s32 0, %v472
        %v474 = vrot.slane %v446, %v473
        %vm475 = vcmp.eq.s32.totalorder %v449, %v474
        %vm476 = vcmp.eq.s32.totalorder %v452, %v474
        %vm477 = vcmp.eq.s32.totalorder %v455, %v474
        %vm478 = vcmp.eq.s32.totalorder %v458, %v474
        %vm479 = vcmp.eq.s32.totalorder %v461, %v474
        %vm480 = vcmp.eq.s32.totalorder %v464, %v474
        %vm481 = vcmp.eq.s32.totalorder %v467, %v474
        %vm482 = vcmp.eq.s32.totalorder %v470, %v474
        %v483 = vsel %vm475, 1, 0
        %v484 = vsel %vm476, 1, 0
        %v485 = vsel %vm477, 1, 0
        %v486 = vsel %vm478, 1, 0
        %v487 = vsel %vm479, 1, 0
        %v488 = vsel %vm480, 1, 0
        %v489 = vsel %vm481, 1, 0
        %v490 = vsel %vm482, 1, 0
        %v491 = vcvt.s32.f32 %v483
        %v492 = vcvt.s32.f32 %v484
        %v493 = vcvt.s32.f32 %v485
        %v494 = vcvt.s32.f32 %v486
        %v495 = vcvt.s32.f32 %v487
        %v496 = vcvt.s32.f32 %v488
        %v497 = vcvt.s32.f32 %v489
        %v498 = vcvt.s32.f32 %v490
        %v499 = vmul.f32 %v491, %v430
        %v500 = vmul.f32 %v492, %v431
        %v501 = vmul.f32 %v493, %v432
        %v502 = vmul.f32 %v494, %v433
        %v503 = vmul.f32 %v495, %v434
        %v504 = vmul.f32 %v496, %v435
        %v505 = vmul.f32 %v497, %v436
        %v506 = vmul.f32 %v498, %v437
        %507 = vadd.xlane.f32.xlu0 %v499
        %v508 = vpop.xlane.xlu0 %507
        %509 = vadd.xlane.f32.xlu0 %v500
        %v510 = vpop.xlane.xlu0 %509
        %511 = vadd.xlane.f32.xlu0 %v501
        %v512 = vpop.xlane.xlu0 %511
        %513 = vadd.xlane.f32.xlu0 %v502
        %v514 = vpop.xlane.xlu0 %513
        %515 = vadd.xlane.f32.xlu0 %v503
        %v516 = vpop.xlane.xlu0 %515
        %517 = vadd.xlane.f32.xlu0 %v504
        %v518 = vpop.xlane.xlu0 %517
        %519 = vadd.xlane.f32.xlu0 %v505
        %v520 = vpop.xlane.xlu0 %519
        %521 = vadd.xlane.f32.xlu0 %v506
        %v522 = vpop.xlane.xlu0 %521
        %v523 = vlaneseq
        %v524 = vand.u32 %v523, 127
        %vm525 = vcmp.lt.s32.totalorder %v524, 8
        %v526 = vsel %vm525, 1, 0
        %vm527 = vcmp.eq.s32.totalorder %v526, 1
        %v528 = vsel %vm527, %v430, -1e+30
        %v529 = vsel %vm527, %v431, -1e+30
        %v530 = vsel %vm527, %v432, -1e+30
        %v531 = vsel %vm527, %v433, -1e+30
        %v532 = vsel %vm527, %v434, -1e+30
        %v533 = vsel %vm527, %v435, -1e+30
        %v534 = vsel %vm527, %v436, -1e+30
        %v535 = vsel %vm527, %v437, -1e+30
        %536 = vmax.xlane.f32.xlu0 %v528
        %v537 = vpop.xlane.xlu0 %536
        %538 = vmax.xlane.f32.xlu0 %v529
        %v539 = vpop.xlane.xlu0 %538
        %540 = vmax.xlane.f32.xlu0 %v530
        %v541 = vpop.xlane.xlu0 %540
        %542 = vmax.xlane.f32.xlu0 %v531
        %v543 = vpop.xlane.xlu0 %542
        %544 = vmax.xlane.f32.xlu0 %v532
        %v545 = vpop.xlane.xlu0 %544
        %546 = vmax.xlane.f32.xlu0 %v533
        %v547 = vpop.xlane.xlu0 %546
        %548 = vmax.xlane.f32.xlu0 %v534
        %v549 = vpop.xlane.xlu0 %548
        %550 = vmax.xlane.f32.xlu0 %v535
        %v551 = vpop.xlane.xlu0 %550
        %v552 = vsub.f32 %v528, %v537
        %v553 = vsub.f32 %v529, %v539
        %v554 = vsub.f32 %v530, %v541
        %v555 = vsub.f32 %v531, %v543
        %v556 = vsub.f32 %v532, %v545
        %v557 = vsub.f32 %v533, %v547
        %v558 = vsub.f32 %v534, %v549
        %v559 = vsub.f32 %v535, %v551
        %v560 = vmul.f32 %v552, 1.442695
        %v561 = vpow.pop %v560
        %v562 = vmul.f32 %v553, 1.442695
        %v563 = vpow.pop %v562
        %v564 = vmul.f32 %v554, 1.442695
        %v565 = vpow.pop %v564
        %v566 = vmul.f32 %v555, 1.442695
        %v567 = vpow.pop %v566
        %v568 = vmul.f32 %v556, 1.442695
        %v569 = vpow.pop %v568
        %v570 = vmul.f32 %v557, 1.442695
        %v571 = vpow.pop %v570
        %v572 = vmul.f32 %v558, 1.442695
        %v573 = vpow.pop %v572
        %v574 = vmul.f32 %v559, 1.442695
        %v575 = vpow.pop %v574
        %576 = vadd.xlane.f32.xlu0 %v561
        %v577 = vpop.xlane.xlu0 %576
        %578 = vadd.xlane.f32.xlu0 %v563
        %v579 = vpop.xlane.xlu0 %578
        %580 = vadd.xlane.f32.xlu0 %v565
        %v581 = vpop.xlane.xlu0 %580
        %582 = vadd.xlane.f32.xlu0 %v567
        %v583 = vpop.xlane.xlu0 %582
        %584 = vadd.xlane.f32.xlu0 %v569
        %v585 = vpop.xlane.xlu0 %584
        %586 = vadd.xlane.f32.xlu0 %v571
        %v587 = vpop.xlane.xlu0 %586
        %588 = vadd.xlane.f32.xlu0 %v573
        %v589 = vpop.xlane.xlu0 %588
        %590 = vadd.xlane.f32.xlu0 %v575
        %v591 = vpop.xlane.xlu0 %590
        %v592 = vlog2.pop %v577
        %v593 = vmul.f32 %v592, 0.6931472
        %v594 = vlog2.pop %v579
        %v595 = vmul.f32 %v594, 0.6931472
        %v596 = vlog2.pop %v581
        %v597 = vmul.f32 %v596, 0.6931472
        %v598 = vlog2.pop %v583
        %v599 = vmul.f32 %v598, 0.6931472
        %v600 = vlog2.pop %v585
        %v601 = vmul.f32 %v600, 0.6931472
        %v602 = vlog2.pop %v587
        %v603 = vmul.f32 %v602, 0.6931472
        %v604 = vlog2.pop %v589
        %v605 = vmul.f32 %v604, 0.6931472
        %v606 = vlog2.pop %v591
        %v607 = vmul.f32 %v606, 0.6931472
        %v608 = vadd.f32 %v537, %v593
        %v609 = vadd.f32 %v539, %v595
        %v610 = vadd.f32 %v541, %v597
        %v611 = vadd.f32 %v543, %v599
        %v612 = vadd.f32 %v545, %v601
        %v613 = vadd.f32 %v547, %v603
        %v614 = vadd.f32 %v549, %v605
        %v615 = vadd.f32 %v551, %v607
        %v616 = vld [vmem:[%s260] sm:$0xff]
        %v617 = vld [vmem:[%s260 + $0x8] sm:$0xff]
        %v618 = vld [vmem:[%s260 + $0x10] sm:$0xff]
        %v619 = vld [vmem:[%s260 + $0x18] sm:$0xff]
        %v620 = vld [vmem:[%s260 + $0x20] sm:$0xff]
        %v621 = vld [vmem:[%s260 + $0x28] sm:$0xff]
        %v622 = vld [vmem:[%s260 + $0x30] sm:$0xff]
        %v623 = vld [vmem:[%s260 + $0x38] sm:$0xff]
        %v624 = vrcp.pop %v616
        %v625 = vmul.f32 %v508, %v624
        %v626 = vrcp.pop %v617
        %v627 = vmul.f32 %v510, %v626
        %v628 = vrcp.pop %v618
        %v629 = vmul.f32 %v512, %v628
        %v630 = vrcp.pop %v619
        %v631 = vmul.f32 %v514, %v630
        %v632 = vrcp.pop %v620
        %v633 = vmul.f32 %v516, %v632
        %v634 = vrcp.pop %v621
        %v635 = vmul.f32 %v518, %v634
        %v636 = vrcp.pop %v622
        %v637 = vmul.f32 %v520, %v636
        %v638 = vrcp.pop %v623
        %v639 = vmul.f32 %v522, %v638
        %v640 = vsub.f32 %v625, %v608
        %v641 = vsub.f32 %v627, %v609
        %v642 = vsub.f32 %v629, %v610
        %v643 = vsub.f32 %v631, %v611
        %v644 = vsub.f32 %v633, %v612
        %v645 = vsub.f32 %v635, %v613
        %v646 = vsub.f32 %v637, %v614
        %v647 = vsub.f32 %v639, %v615
        %v648 = vmul.f32 %v640, -1.0
        %v649 = vmul.f32 %v641, -1.0
        %v650 = vmul.f32 %v642, -1.0
        %v651 = vmul.f32 %v643, -1.0
        %v652 = vmul.f32 %v644, -1.0
        %v653 = vmul.f32 %v645, -1.0
        %v654 = vmul.f32 %v646, -1.0
        %v655 = vmul.f32 %v647, -1.0
        %s656 = smul.u32 %s19, 64
        %v657 = vlaneseq
        %v658 = vshrl.u32 %v657, 7
        %v659 = vadd.s32 %v658, 8
        %v660 = vadd.s32 %v658, 16
        %v661 = vadd.s32 %v658, 24
        %v662 = vadd.s32 %v658, 32
        %v663 = vadd.s32 %v658, 40
        %v664 = vadd.s32 %v658, 48
        %v665 = vadd.s32 %v658, 56
        %v666 = vstv %s656
        %v667 = vadd.s32 %v666, %v658
        %v668 = vadd.s32 %v666, %v659
        %v669 = vadd.s32 %v666, %v660
        %v670 = vadd.s32 %v666, %v661
        %v671 = vadd.s32 %v666, %v662
        %v672 = vadd.s32 %v666, %v663
        %v673 = vadd.s32 %v666, %v664
        %v674 = vadd.s32 %v666, %v665
        %vm675 = vcmp.lt.s32.totalorder %v667, 8
        %vm676 = vcmp.lt.s32.totalorder %v668, 8
        %vm677 = vcmp.lt.s32.totalorder %v669, 8
        %vm678 = vcmp.lt.s32.totalorder %v670, 8
        %vm679 = vcmp.lt.s32.totalorder %v671, 8
        %vm680 = vcmp.lt.s32.totalorder %v672, 8
        %vm681 = vcmp.lt.s32.totalorder %v673, 8
        %vm682 = vcmp.lt.s32.totalorder %v674, 8
        %v683 = vsel %vm675, %v648, 0.0
        %v684 = vsel %vm676, %v649, 0.0
        %v685 = vsel %vm677, %v650, 0.0
        %v686 = vsel %vm678, %v651, 0.0
        %v687 = vsel %vm679, %v652, 0.0
        %v688 = vsel %vm680, %v653, 0.0
        %v689 = vsel %vm681, %v654, 0.0
        %v690 = vsel %vm682, %v655, 0.0
        %vm691 = vcmask 7168
        %v692 = vsel %vm691, %v683, 0.0
        %v693 = vsel %vm691, %v684, 0.0
        %v694 = vadd.f32 %v692, %v693
        %v695 = vsel %vm691, %v685, 0.0
        %v696 = vadd.f32 %v694, %v695
        %v697 = vsel %vm691, %v686, 0.0
        %v698 = vadd.f32 %v696, %v697
        %v699 = vsel %vm691, %v687, 0.0
        %v700 = vadd.f32 %v698, %v699
        %v701 = vsel %vm691, %v688, 0.0
        %v702 = vadd.f32 %v700, %v701
        %v703 = vsel %vm691, %v689, 0.0
        %v704 = vadd.f32 %v702, %v703
        %v705 = vsel %vm691, %v690, 0.0
        %v706 = vadd.f32 %v704, %v705
        %707 = vadd.xlane.f32.xlu0 %v706
        %v708 = vpop.xlane.xlu0 %707
        %v709 = vrot.slane %v708, 4
        %v710 = vadd.f32 %v708, %v709
        %v711 = vrot.slane %v710, 2
        %v712 = vadd.f32 %v710, %v711
        %v713 = vrot.slane %v712, 1
        %v714 = vadd.f32 %v712, %v713
        %s715 = vtos %v714
        %v716 = vstv %s715
        %717 = vst [vmem:[%s249] sm:$0x1] %v716
        %s718 = sand.u32 %s147, 1
        %s719 = scalar_lea.sflag [#allocation3], %s718
        %s720 = sand.u32 %s147, 1
        %s721 = scalar_lea.vmem [#allocation2], %s720
        // Predicated region
        $region41: #{tpu_custom_call.1} parent=39 // pred_check
          %p722 = pneg %p157
        $region42: #{tpu_custom_call.1} parent=39 // pred_check_branch
          %724 = sbr.rel (%p722) target = $region44
        $region43: #{tpu_custom_call.1} parent=39 // pred_region
          %s726 = ssub.s32 16, 16
          %727 = vsyncadd %s719, %s726
          %s728 = smul.addr %s19, 16
          %s729 = scalar_lea.hbm %s5, %s728
          %s731 = sshll.u32 %s721, 4
          %s732 = int_to_ptr.vmem [resolvable:$true] %s731
          %734 = dma.vmem_to_hbm [thread:$0]  %s732, 16, %s729, %s719
        $region44: #{tpu_custom_call.1} parent=39 // pred_fallthru
          _
      $region40: #{tpu_custom_call.1} parent=5 // pred_fallthru
        _
      %p735 = scmp.le.s32.totalorder 2, %s14
      // Predicated region
      $region45: #{tpu_custom_call.1} parent=5 // pred_check
        %p736 = pneg %p735
      $region46: #{tpu_custom_call.1} parent=5 // pred_check_branch
        %738 = sbr.rel (%p736) target = $region48
      $region47: #{tpu_custom_call.1} parent=5 // pred_region
        %s739 = ssub.s32 %s14, 2
        // Predicated region
        $region49: #{tpu_custom_call.1} parent=47 // pred_check
          %p740 = pneg %p163
        $region50: #{tpu_custom_call.1} parent=47 // pred_check_branch
          %742 = sbr.rel (%p740) target = $region52
        $region51: #{tpu_custom_call.1} parent=47 // pred_region
          %s743 = sand.u32 %s148, 1
          %s744 = scalar_lea.sflag [#allocation3], %s743
          %s745 = sand.u32 %s148, 1
          %s746 = scalar_lea.vmem [#allocation2], %s745
          %747 = dma.done %s744, 16
        $region52: #{tpu_custom_call.1} parent=47 // pred_fallthru
          _
      $region48: #{tpu_custom_call.1} parent=5 // pred_fallthru
        _
    $region6: #{tpu_custom_call.1} parent=1 // loop_footer
      %s18 = sadd.s32 1, %s14
    $region7: #{tpu_custom_call.1} parent=1 // loop_footer_branch
      %13 = sbr.rel target = $region3
    $region8: #{tpu_custom_call.1} parent=1 // loop_exit
      _
    %748 = vsyncpa [#allocation3], 1
    %s749 = scalar_lea.sflag [#allocation3], 1
    %750 = vsyncpa %s749, 1

</llo_original>
